<compile_context>
chip_gen: v6e
topology: v6e:2x2x1
jax: 0.10.0
libtpu: 0.0.40
codegen_flags: <defaults>
</compile_context>

<pallas_src>
import functools

import numpy as np
import jax
import jax.numpy as jnp
from jax.experimental import pallas as pl
from jax.experimental.pallas import tpu as pltpu


# ----------------------------------------------------------------------------
# Generation-aware constants (review items 4 & 8): never claim the whole
# physical VMEM; smaller back-resize row tiles on v7x (64 MiB VMEM).
# ----------------------------------------------------------------------------
def _vmem_capacity_bytes() -> int:
    try:
        return int(pltpu.get_tpu_info().vmem_capacity_bytes)
    except Exception:
        return 64 * 1024 * 1024            # conservative (v7x-sized) fallback


_VMEM_CAP = _vmem_capacity_bytes()
_VMEM_LIMIT = int(_VMEM_CAP * 3 // 4)      # ~48 MiB on v7x, ~96 MiB on v5e/v6e
_BACK_TILE_MAX = 256 if _VMEM_CAP <= 64 * 1024 * 1024 else 512


def _pad_to(x: int, m: int) -> int:
    return ((x + m - 1) // m) * m


def _choose_row_tile(n_rows: int):
    """Row tile (multiple of 8, <=128) and padded row count it divides exactly."""
    r8 = _pad_to(n_rows, 8)
    if r8 <= 128:
        return r8, r8
    for t in range(128, 31, -8):
        if r8 % t == 0:
            return t, r8
    return 128, _pad_to(n_rows, 128)


# ----------------------------------------------------------------------------
# Separable bilinear resize weights (half-pixel centers, align_corners=False).
# antialias=True widens the triangle filter on downscale, matching
# torch.nn.functional.interpolate(..., mode='bilinear', antialias=True).
# ----------------------------------------------------------------------------
def _resize_weight_matrix(in_size: int, out_size: int, antialias: bool) -> np.ndarray:
    scale = in_size / out_size
    support = scale if (antialias and scale > 1.0) else 1.0
    centers = (np.arange(out_size) + 0.5) * scale - 0.5          # [out]
    j = np.arange(in_size)                                        # [in]
    x = (j[None, :] - centers[:, None]) / support
    w = np.clip(1.0 - np.abs(x), 0.0, None)
    w = w / np.maximum(w.sum(axis=1, keepdims=True), 1e-12)
    return w.astype(np.float32)                                   # [out, in]


def _replicate_pad_rows(w: np.ndarray, out_pad: int) -> np.ndarray:
    # Padded output positions replicate the last valid position, so padded
    # pixels are duplicates of valid ones (min/max/median stay untouched).
    out = w.shape[0]
    if out_pad == out:
        return w
    return np.concatenate([w, np.repeat(w[-1:], out_pad - out, axis=0)], axis=0)


# ----------------------------------------------------------------------------
# Kernel 1: clamp(0,1) + antialiased separable resize.  One channel-batched
# (C*H, W) @ (W, Wn) width matmul + C height matmuls, all bf16 on the MXU.
# ----------------------------------------------------------------------------
def _resize_kernel(x_ref, awt_ref, ah_ref, rgb_ref, *, n_channels: int):
    x = jnp.clip(x_ref[...], 0.0, 1.0).astype(jnp.bfloat16)       # (C, H, W)
    c, h, w = x.shape
    wn = awt_ref.shape[-1]
    xw = jnp.dot(x.reshape(c * h, w), awt_ref[...],
                 preferred_element_type=jnp.float32)               # (C*H, Wn)
    xw = xw.reshape(c, h, wn).astype(jnp.bfloat16)
    for ci in range(n_channels):
        rgb_ref[ci] = jnp.dot(ah_ref[...], xw[ci],
                              preferred_element_type=jnp.float32)  # (Hn, Wn)


def resize_rgb(x, new_h, new_w, hn_pad, wn_pad, *, antialias=True):
    c, h, w = x.shape
    ah = _replicate_pad_rows(_resize_weight_matrix(h, new_h, antialias), hn_pad)
    aw = _replicate_pad_rows(_resize_weight_matrix(w, new_w, antialias), wn_pad)
    ah = jnp.asarray(ah, dtype=jnp.bfloat16)                       # (Hn_pad, H)
    awt = jnp.asarray(aw.T, dtype=jnp.bfloat16)                    # (W, Wn_pad)
    kernel = functools.partial(_resize_kernel, n_channels=c)
    return pl.pallas_call(
        kernel,
        out_shape=jax.ShapeDtypeStruct((c, hn_pad, wn_pad), jnp.float32),
        compiler_params=pltpu.CompilerParams(vmem_limit_bytes=_VMEM_LIMIT),
    )(x.astype(jnp.float32), awt, ah)


# ----------------------------------------------------------------------------
# Kernel 2: surrogate "denoise" per repeat, fully parallel (repeat x row-tile)
# grid.  Also emits per-row min/max partials so the ensemble pass never has to
# re-read depth_preds from HBM to get the per-prediction min/max.
#   z0        = sum_c w[r,c] * rgb[c]
#   z_{t+1}   = z_t - alpha_t * (z_t - tanh(z_t + b_r))
#   depth_r   = clip(z_T, -1, 1)               (torch.clip(..., -1, 1))
# ----------------------------------------------------------------------------
def _denoise_kernel(w_ref, alpha_ref, rgb_ref, o_ref, mn_ref, mx_ref,
                    *, n_channels: int, n_steps: int):
    r = pl.program_id(0)
    z = w_ref[r, 0] * rgb_ref[0]
    for ci in range(1, n_channels):
        z = z + w_ref[r, ci] * rgb_ref[ci]
    b = w_ref[r, n_channels]

    def body(t, z):
        a = alpha_ref[t]
        return z - a * (z - jnp.tanh(z + b))

    z = jax.lax.fori_loop(0, n_steps, body, z, unroll=True)
    z = jnp.clip(z, -1.0, 1.0)
    o_ref[0] = z
    mn_ref[0] = jnp.min(z, axis=-1, keepdims=True)
    mx_ref[0] = jnp.max(z, axis=-1, keepdims=True)


def denoise(rgb, w_mix, alphas, n_repeat, tile_h):
    c, hn_pad, wn_pad = rgb.shape
    assert hn_pad % tile_h == 0
    n_tiles = hn_pad // tile_h
    n_steps = int(alphas.shape[0])
    kernel = functools.partial(_denoise_kernel, n_channels=c, n_steps=n_steps)

    flops = int(n_repeat * hn_pad * wn_pad * (2 * c + 8 * max(n_steps, 1) + 4))
    transcendentals = int(n_repeat * hn_pad * wn_pad * max(n_steps, 1))
    bytes_accessed = int(4 * (n_repeat * c * hn_pad * wn_pad
                              + n_repeat * hn_pad * wn_pad
                              + 2 * n_repeat * hn_pad))

    return pl.pallas_call(
        kernel,
        out_shape=(
            jax.ShapeDtypeStruct((n_repeat, hn_pad, wn_pad), jnp.float32),
            jax.ShapeDtypeStruct((n_repeat, hn_pad, 1), jnp.float32),
            jax.ShapeDtypeStruct((n_repeat, hn_pad, 1), jnp.float32),
        ),
        grid=(n_repeat, n_tiles),
        in_specs=[
            pl.BlockSpec(memory_space=pltpu.MemorySpace.SMEM),           # w_mix
            pl.BlockSpec(memory_space=pltpu.MemorySpace.SMEM),           # alphas
            pl.BlockSpec((c, tile_h, wn_pad), lambda r, i: (0, i, 0)),   # rgb tile
        ],
        out_specs=(
            pl.BlockSpec((1, tile_h, wn_pad), lambda r, i: (r, i, 0)),
            pl.BlockSpec((1, tile_h, 1), lambda r, i: (r, i, 0)),
            pl.BlockSpec((1, tile_h, 1), lambda r, i: (r, i, 0)),
        ),
        compiler_params=pltpu.CompilerParams(
            dimension_semantics=("parallel", "parallel"),
            vmem_limit_bytes=_VMEM_LIMIT),
        cost_estimate=pl.CostEstimate(flops=flops,
                                      transcendentals=transcendentals,
                                      bytes_accessed=bytes_accessed),
    )(w_mix, alphas, rgb)


# ----------------------------------------------------------------------------
# Kernel 3: ensemble over repeats.  Global per-prediction min/max arrive as
# SMEM scalars (reduced in XLA from the tiny per-row partials of kernel 2).
# Each prediction is min-max normalized (scalar reciprocal hoisted), then the
# per-pixel median is taken: 4-op median-of-3 for n==3, odd/even network
# otherwise, processed in 8-row chunks to keep the live vreg set small.
# TODO(synk): ensemble_depths' iterative scale/shift alignment (max_iter=5,
# tol=1e-3, regularizer_strength=0.02) is simplified to min-max normalization.
# ----------------------------------------------------------------------------
def _ensemble_kernel(mn_ref, mx_ref, d_ref, o_ref, *, n: int, rows_per_chunk: int):
    mins = [mn_ref[i] for i in range(n)]
    invs = [1.0 / jnp.maximum(mx_ref[i] - mins[i], 1e-6) for i in range(n)]
    tile_h = o_ref.shape[0]
    n_chunks = tile_h // rows_per_chunk

    def chunk(ci, carry):
        r0 = pl.multiple_of(ci * rows_per_chunk, rows_per_chunk)
        vals = [(d_ref[i, pl.ds(r0, rows_per_chunk), :] - mins[i]) * invs[i]
                for i in range(n)]
        if n == 1:
            med = vals[0]
        elif n == 3:
            a, b, c = vals
            med = jnp.maximum(jnp.minimum(a, b),
                              jnp.minimum(jnp.maximum(a, b), c))
        else:
            for p in range(n):
                for j in range(p % 2, n - 1, 2):
                    lo = jnp.minimum(vals[j], vals[j + 1])
                    hi = jnp.maximum(vals[j], vals[j + 1])
                    vals[j], vals[j + 1] = lo, hi
            if n % 2 == 1:
                med = vals[n // 2]
            else:
                med = 0.5 * (vals[n // 2 - 1] + vals[n // 2])
        o_ref[pl.ds(r0, rows_per_chunk), :] = med
        return carry

    jax.lax.fori_loop(0, n_chunks, chunk, 0, unroll=True)


def ensemble_median(depth_preds, mn, mx, tile_h):
    n, hn_pad, wn_pad = depth_preds.shape
    n_tiles = hn_pad // tile_h
    kernel = functools.partial(_ensemble_kernel, n=n, rows_per_chunk=8)
    return pl.pallas_call(
        kernel,
        out_shape=jax.ShapeDtypeStruct((hn_pad, wn_pad), jnp.float32),
        grid=(n_tiles,),
        in_specs=[
            pl.BlockSpec(memory_space=pltpu.MemorySpace.SMEM),   # mins
            pl.BlockSpec(memory_space=pltpu.MemorySpace.SMEM),   # maxes
            pl.BlockSpec((n, tile_h, wn_pad), lambda i: (0, i, 0)),
        ],
        out_specs=pl.BlockSpec((tile_h, wn_pad), lambda i: (i, 0)),
        compiler_params=pltpu.CompilerParams(
            dimension_semantics=("parallel",),
            vmem_limit_bytes=_VMEM_LIMIT),
    )(mn, mx, depth_preds)


# ----------------------------------------------------------------------------
# Kernel 4: bilinear resize back to the original resolution (cv2.resize
# default), with the crop of the lane-padded inner grid folded into the weight
# matrices, + the `inv=True` path (clamp at 1e-8, EUP approximate reciprocal).
# ----------------------------------------------------------------------------
def _resize_invert_kernel(d_ref, bh_ref, bwt_ref, o_ref, *, inv: bool):
    tmp = jnp.dot(bh_ref[...], d_ref[...], preferred_element_type=jnp.float32)
    out = jnp.dot(tmp, bwt_ref[...], preferred_element_type=jnp.float32)
    if inv:
        # depth_pred[depth_pred < 1e-8] = 1e-8 ; 1 / depth_pred
        out = pl.reciprocal(jnp.maximum(out, 1e-8), approx=True)
    o_ref[...] = out


def resize_invert(depth, new_h, new_w, out_h, out_w, *, inv):
    hn_pad, wn_pad = depth.shape
    bh = np.zeros((out_h, hn_pad), np.float32)
    bh[:, :new_h] = _resize_weight_matrix(new_h, out_h, antialias=False)
    bwt = np.zeros((wn_pad, out_w), np.float32)
    bwt[:new_w, :] = _resize_weight_matrix(new_w, out_w, antialias=False).T
    bh = jnp.asarray(bh)
    bwt = jnp.asarray(bwt)

    tile_h = out_h if out_h <= _BACK_TILE_MAX else _BACK_TILE_MAX
    grid = (pl.cdiv(out_h, tile_h),)
    kernel = functools.partial(_resize_invert_kernel, inv=inv)
    out_shape = jax.ShapeDtypeStruct((out_h, out_w), jnp.float32)
    cost = pl.CostEstimate(
        flops=int(2 * out_h * hn_pad * wn_pad + 2 * out_h * wn_pad * out_w),
        transcendentals=int(out_h * out_w) if inv else 0,
        bytes_accessed=int(4 * (hn_pad * wn_pad + out_h * hn_pad
                                + wn_pad * out_w + out_h * out_w)))

    def call(use_buffered):
        def const_spec(shape):
            if use_buffered:
                return pl.BlockSpec(shape, lambda i: (0, 0),
                                    pipeline_mode=pl.Buffered(1))
            return pl.BlockSpec(shape, lambda i: (0, 0))
        return pl.pallas_call(
            kernel,
            out_shape=out_shape,
            grid=grid,
            in_specs=[
                const_spec((hn_pad, wn_pad)),                        # source depth
                pl.BlockSpec((tile_h, hn_pad), lambda i: (i, 0)),    # H weights (row block)
                const_spec((wn_pad, out_w)),                         # W weights
            ],
            out_specs=pl.BlockSpec((tile_h, out_w), lambda i: (i, 0)),
            compiler_params=pltpu.CompilerParams(
                dimension_semantics=("parallel",),
                vmem_limit_bytes=_VMEM_LIMIT),
            cost_estimate=cost,
        )(depth, bh, bwt)

    try:
        return call(True)
    except Exception:
        # TODO(synk): pl.Buffered(1) not accepted by this jax version; retry plain.
        return call(False)


# ----------------------------------------------------------------------------
# Wrapper mirroring MariGold.forward
# ----------------------------------------------------------------------------
class MariGoldPallas:
    def __init__(self, n_repeat=3, denoise_steps=4, resize_to_max_res=12,
                 param_key=None):
        self.n_repeat = n_repeat
        self.denoise_steps = denoise_steps
        self.resize_to_max_res = resize_to_max_res   # module default is 768
        self.regularizer_strength = 0.02
        self.max_iter = 5
        self.tol = 0.001
        if param_key is None:
            param_key = jax.random.PRNGKey(42)
        k1, _ = jax.random.split(param_key)
        # Deterministic surrogate-model parameters (3 mix weights + 1 bias / repeat).
        self.w_mix = (0.5 * jax.random.normal(k1, (n_repeat, 4))).astype(jnp.float32)
        if denoise_steps > 0:
            self.alphas = jnp.linspace(0.9, 0.1, denoise_steps).astype(jnp.float32)
        else:
            # Guard denoise_steps == 0: one zero-alpha (no-op) step instead of a
            # zero-length SMEM input.
            self.alphas = jnp.zeros((1,), jnp.float32)

    def __call__(self, input_image, conditioning_depth=None, inv=True, n_repeat=None):
        # TODO(synk): conditioning_depth -> model.encode_depth (VAE) not translated.
        assert conditioning_depth is None
        n_rep = n_repeat or self.n_repeat
        assert 1 <= n_rep <= self.n_repeat
        c, h, w = input_image.shape

        ds = min(self.resize_to_max_res / w, self.resize_to_max_res / h)
        new_h, new_w = int(h * ds), int(w * ds)

        tile_h, hn_pad = _choose_row_tile(new_h)
        wn_pad = _pad_to(new_w, 128)     # lane-dense inner width (crop folded into kernel 4)

        # 1) clamp(0,1) + antialiased bilinear resize (bf16 MXU matmuls)
        rgb = resize_rgb(input_image, new_h, new_w, hn_pad, wn_pad)

        # 2) per-repeat surrogate denoise on a fully parallel grid; per-row
        #    min/max partials come out of the same kernel.
        depth_preds, row_mn, row_mx = denoise(rgb, self.w_mix[:n_rep],
                                              self.alphas, n_rep, tile_h)

        # 3) ensemble (median of min-max-normalized predictions) if > 1 repeat
        if n_rep > 1:
            mn = jnp.min(row_mn, axis=(1, 2))
            mx = jnp.max(row_mx, axis=(1, 2))
            depth = ensemble_median(depth_preds, mn, mx, tile_h)
        else:
            depth = depth_preds[0]

        # 4) resize back to the input resolution, optionally invert
        return resize_invert(depth, new_h, new_w, h, w, inv=inv)


if __name__ == "__main__":
    key = jax.random.PRNGKey(0)
    # CHW RGB image; values slightly outside [0,1] so the clamp matters.
    input_image = jax.random.uniform(key, (3, 16, 16), dtype=jnp.float32,
                                     minval=-0.2, maxval=1.2)

    model = MariGoldPallas(n_repeat=3, denoise_steps=4, resize_to_max_res=12)
    depth = model(input_image, inv=True)
    depth = jax.block_until_ready(depth)

    assert depth.shape == (16, 16), depth.shape
    assert depth.dtype == jnp.float32
    assert bool(jnp.all(jnp.isfinite(depth)))
    print("KERNEL_OK")
</pallas_src>

<mosaic_0001>
module attributes {stable_mosaic.version = 11 : i64} {
  func.func @_resize_kernel(%arg0: memref<3x16x16xf32, #tpu.memory_space<vmem>>, %arg1: memref<16x128xbf16, #tpu.memory_space<vmem>>, %arg2: memref<16x16xbf16, #tpu.memory_space<vmem>>, %arg3: memref<3x16x128xf32, #tpu.memory_space<vmem>>) attributes {dimension_semantics = [], scalar_prefetch = 0 : i64, scratch_operands = 0 : i64, tpu.core_type = #tpu.core_type<tc>} {
    %c0 = arith.constant 0 : index
    %c0_0 = arith.constant 0 : index
    %c0_1 = arith.constant 0 : index
    %0 = vector.load %arg0[%c0, %c0_0, %c0_1] : memref<3x16x16xf32, #tpu.memory_space<vmem>>, vector<3x16x16xf32>
    %cst = arith.constant 0.000000e+00 : f32
    %cst_2 = arith.constant 1.000000e+00 : f32
    %1 = vector.broadcast %cst : f32 to vector<3x16x16xf32>
    %2 = arith.maximumf %1, %0 : vector<3x16x16xf32>
    %3 = vector.broadcast %cst_2 : f32 to vector<3x16x16xf32>
    %4 = arith.minimumf %3, %2 : vector<3x16x16xf32>
    %5 = arith.truncf %4 : vector<3x16x16xf32> to vector<3x16x16xbf16>
    %6 = vector.shape_cast %5 : vector<3x16x16xbf16> to vector<48x16xbf16>
    %c0_3 = arith.constant 0 : index
    %c0_4 = arith.constant 0 : index
    %7 = vector.load %arg1[%c0_3, %c0_4] : memref<16x128xbf16, #tpu.memory_space<vmem>>, vector<16x128xbf16>
    %cst_5 = arith.constant dense<0.000000e+00> : vector<48x128xf32>
    %8 = tpu.matmul %6, %7, %cst_5 {dimension_numbers = #tpu.dot_dimension_numbers<[1], [0], [0], [1], [0, 0, 1, 1], [], []>} : vector<48x16xbf16>, vector<16x128xbf16>, vector<48x128xf32> -> vector<48x128xf32>
    %9 = vector.shape_cast %8 : vector<48x128xf32> to vector<3x16x128xf32>
    %10 = arith.truncf %9 : vector<3x16x128xf32> to vector<3x16x128xbf16>
    %c0_6 = arith.constant 0 : index
    %c0_7 = arith.constant 0 : index
    %11 = vector.load %arg2[%c0_6, %c0_7] : memref<16x16xbf16, #tpu.memory_space<vmem>>, vector<16x16xbf16>
    %12 = vector.extract_strided_slice %10 {offsets = [0, 0, 0], sizes = [1, 16, 128], strides = [1, 1, 1]} : vector<3x16x128xbf16> to vector<1x16x128xbf16>
    %13 = vector.shape_cast %12 : vector<1x16x128xbf16> to vector<16x128xbf16>
    %cst_8 = arith.constant dense<0.000000e+00> : vector<16x128xf32>
    %14 = tpu.matmul %11, %13, %cst_8 {dimension_numbers = #tpu.dot_dimension_numbers<[1], [0], [0], [1], [0, 0, 1, 1], [], []>} : vector<16x16xbf16>, vector<16x128xbf16>, vector<16x128xf32> -> vector<16x128xf32>
    %c0_9 = arith.constant 0 : index
    %c0_10 = arith.constant 0 : index
    %c0_11 = arith.constant 0 : index
    %15 = vector.load %arg3[%c0_9, %c0_10, %c0_11] : memref<3x16x128xf32, #tpu.memory_space<vmem>>, vector<1x16x128xf32>
    %16 = vector.shape_cast %15 : vector<1x16x128xf32> to vector<16x128xf32>
    %17 = vector.shape_cast %14 : vector<16x128xf32> to vector<1x16x128xf32>
    tpu.vector_store %arg3[%c0_9, %c0_10, %c0_11], %17 {strides = array<i32>} : memref<3x16x128xf32, #tpu.memory_space<vmem>>, vector<1x16x128xf32>,
    %c0_12 = arith.constant 0 : index
    %c0_13 = arith.constant 0 : index
    %18 = vector.load %arg2[%c0_12, %c0_13] : memref<16x16xbf16, #tpu.memory_space<vmem>>, vector<16x16xbf16>
    %19 = vector.extract_strided_slice %10 {offsets = [1, 0, 0], sizes = [1, 16, 128], strides = [1, 1, 1]} : vector<3x16x128xbf16> to vector<1x16x128xbf16>
    %20 = vector.shape_cast %19 : vector<1x16x128xbf16> to vector<16x128xbf16>
    %cst_14 = arith.constant dense<0.000000e+00> : vector<16x128xf32>
    %21 = tpu.matmul %18, %20, %cst_14 {dimension_numbers = #tpu.dot_dimension_numbers<[1], [0], [0], [1], [0, 0, 1, 1], [], []>} : vector<16x16xbf16>, vector<16x128xbf16>, vector<16x128xf32> -> vector<16x128xf32>
    %c1 = arith.constant 1 : index
    %c0_15 = arith.constant 0 : index
    %c0_16 = arith.constant 0 : index
    %22 = vector.load %arg3[%c1, %c0_15, %c0_16] : memref<3x16x128xf32, #tpu.memory_space<vmem>>, vector<1x16x128xf32>
    %23 = vector.shape_cast %22 : vector<1x16x128xf32> to vector<16x128xf32>
    %24 = vector.shape_cast %21 : vector<16x128xf32> to vector<1x16x128xf32>
    tpu.vector_store %arg3[%c1, %c0_15, %c0_16], %24 {strides = array<i32>} : memref<3x16x128xf32, #tpu.memory_space<vmem>>, vector<1x16x128xf32>,
    %c0_17 = arith.constant 0 : index
    %c0_18 = arith.constant 0 : index
    %25 = vector.load %arg2[%c0_17, %c0_18] : memref<16x16xbf16, #tpu.memory_space<vmem>>, vector<16x16xbf16>
    %26 = vector.extract_strided_slice %10 {offsets = [2, 0, 0], sizes = [1, 16, 128], strides = [1, 1, 1]} : vector<3x16x128xbf16> to vector<1x16x128xbf16>
    %27 = vector.shape_cast %26 : vector<1x16x128xbf16> to vector<16x128xbf16>
    %cst_19 = arith.constant dense<0.000000e+00> : vector<16x128xf32>
    %28 = tpu.matmul %25, %27, %cst_19 {dimension_numbers = #tpu.dot_dimension_numbers<[1], [0], [0], [1], [0, 0, 1, 1], [], []>} : vector<16x16xbf16>, vector<16x128xbf16>, vector<16x128xf32> -> vector<16x128xf32>
    %c2 = arith.constant 2 : index
    %c0_20 = arith.constant 0 : index
    %c0_21 = arith.constant 0 : index
    %29 = vector.load %arg3[%c2, %c0_20, %c0_21] : memref<3x16x128xf32, #tpu.memory_space<vmem>>, vector<1x16x128xf32>
    %30 = vector.shape_cast %29 : vector<1x16x128xf32> to vector<16x128xf32>
    %31 = vector.shape_cast %28 : vector<16x128xf32> to vector<1x16x128xf32>
    tpu.vector_store %arg3[%c2, %c0_20, %c0_21], %31 {strides = array<i32>} : memref<3x16x128xf32, #tpu.memory_space<vmem>>, vector<1x16x128xf32>,
    return
  }
}

</mosaic_0001>

<llo_original>
// kernel: tpu_custom_call.1
$region0: #{tpu_custom_call.1}
  #allocation0 [shape = 'u32[]', space=smem, size = 0x4, offset = 0x4, fixed_abs, tag = 'smem constant byte address 0x4 - core index']
  #allocation1 [shape = 'u32[144,128]{1,0:T(1,128)}', space=vmem, size = 0x12000, scoped, tag = 'internal scratch']
  %s0 = inlined_call_operand.hbm [shape: f32[3,16,16], index: 0, kind: input, shape index: {}]
  %s1 = inlined_call_operand.hbm [shape: bf16[16,128], index: 1, kind: input, shape index: {}]
  %s2 = inlined_call_operand.hbm [shape: bf16[16,16], index: 2, kind: input, shape index: {}]
  %s3 = inlined_call_operand.hbm [shape: f32[3,16,128], index: 3, kind: output, shape index: {}]
  %s4 = sld [smem:[#allocation0]]
  $region34: #{tpu_custom_call.1} parent=0
    _
  %s6 = ssub.s32 1, %s4
  %s7 = scalar_select 0, %s6, %s4
  $region1: #{tpu_custom_call.1} parent=0
    #allocation2 [shape = 'u8[24576]{0}', space=vmem, size = 0x6000, scoped, tag = 'input window, operand 0, single buffered']
    #allocation3 [shape = 's32[1]{0}', space=sflag, size = 0x4, scoped, tag = 'scoped memory for tpu_custom_call.1']
    #allocation4 [shape = 's32[1]{0}', space=sflag, size = 0x4, scoped, tag = 'scoped memory for tpu_custom_call.1']
    #allocation5 [shape = 'u8[4096]{0}', space=vmem, size = 0x1000, scoped, tag = 'input window, operand 1, single buffered']
    #allocation6 [shape = 's32[1]{0}', space=sflag, size = 0x4, scoped, tag = 'scoped memory for tpu_custom_call.1']
    #allocation7 [shape = 'u8[4096]{0}', space=vmem, size = 0x1000, scoped, tag = 'input window, operand 2, single buffered']
    #allocation8 [shape = 'u8[24576]{0}', space=vmem, size = 0x6000, scoped, tag = 'output window, operand 0, single buffered']
    %8 = vsyncpa [#allocation3], 0
    %9 = vsyncpa [#allocation6], 0
    %10 = vsyncpa [#allocation4], 0
    // Predicated region
    $region2: #{tpu_custom_call.1} parent=1 // pred_check
      _
    $region3: #{tpu_custom_call.1} parent=1 // pred_check_branch
      %12 = sbr.rel (0) target = $region5
    $region4: #{tpu_custom_call.1} parent=1 // pred_region
      %s14 = ssub.s32 768, 768
      %15 = vsyncadd [#allocation3], %s14
      %s16 = sshll.u32 [#allocation2], 4
      %s17 = int_to_ptr.vmem [resolvable:$true] %s16
      %22 = dma.hbm_to_vmem [thread:$0]  %s0, 768, %s17, [#allocation3], 128, 128, 8
    $region5: #{tpu_custom_call.1} parent=1 // pred_fallthru
      _
    // Predicated region
    $region6: #{tpu_custom_call.1} parent=1 // pred_check
      _
    $region7: #{tpu_custom_call.1} parent=1 // pred_check_branch
      %24 = sbr.rel (0) target = $region9
    $region8: #{tpu_custom_call.1} parent=1 // pred_region
      %s26 = ssub.s32 128, 128
      %27 = vsyncadd [#allocation6], %s26
      %s28 = sshll.u32 [#allocation5], 4
      %s29 = int_to_ptr.vmem [resolvable:$true] %s28
      %34 = dma.hbm_to_vmem [thread:$0]  %s1, 128, %s29, [#allocation6], 64, 64, 4
    $region9: #{tpu_custom_call.1} parent=1 // pred_fallthru
      _
    // Predicated region
    $region10: #{tpu_custom_call.1} parent=1 // pred_check
      _
    $region11: #{tpu_custom_call.1} parent=1 // pred_check_branch
      %36 = sbr.rel (0) target = $region13
    $region12: #{tpu_custom_call.1} parent=1 // pred_region
      %s38 = ssub.s32 128, 128
      %39 = vsyncadd [#allocation6], %s38
      %s40 = sshll.u32 [#allocation7], 4
      %s41 = int_to_ptr.vmem [resolvable:$true] %s40
      %46 = dma.hbm_to_vmem [thread:$0]  %s2, 128, %s41, [#allocation6], 64, 64, 4
    $region13: #{tpu_custom_call.1} parent=1 // pred_fallthru
      _
    // Predicated region
    $region14: #{tpu_custom_call.1} parent=1 // pred_check
      _
    $region15: #{tpu_custom_call.1} parent=1 // pred_check_branch
      %48 = sbr.rel (0) target = $region17
    $region16: #{tpu_custom_call.1} parent=1 // pred_region
      %49 = dma.done [#allocation3], 768
    $region17: #{tpu_custom_call.1} parent=1 // pred_fallthru
      _
    // Predicated region
    $region18: #{tpu_custom_call.1} parent=1 // pred_check
      _
    $region19: #{tpu_custom_call.1} parent=1 // pred_check_branch
      %51 = sbr.rel (0) target = $region21
    $region20: #{tpu_custom_call.1} parent=1 // pred_region
      %52 = dma.done [#allocation6], 128
    $region21: #{tpu_custom_call.1} parent=1 // pred_fallthru
      _
    // Predicated region
    $region22: #{tpu_custom_call.1} parent=1 // pred_check
      _
    $region23: #{tpu_custom_call.1} parent=1 // pred_check_branch
      %54 = sbr.rel (0) target = $region25
    $region24: #{tpu_custom_call.1} parent=1 // pred_region
      %55 = dma.done [#allocation6], 128
    $region25: #{tpu_custom_call.1} parent=1 // pred_fallthru
      _
    %v57 = vld [vmem:[#allocation2] sm:$0xff]
    %v58 = vld [vmem:[#allocation2 + $0x8] sm:$0xff]
    %v59 = vld [vmem:[#allocation2 + $0x10] sm:$0xff]
    %v60 = vld [vmem:[#allocation2 + $0x18] sm:$0xff]
    %v61 = vld [vmem:[#allocation2 + $0x20] sm:$0xff]
    %v62 = vld [vmem:[#allocation2 + $0x28] sm:$0xff]
    %v63 = vmax.f32 %v57, 0.0
    %v64 = vmax.f32 %v58, 0.0
    %v65 = vmax.f32 %v59, 0.0
    %v66 = vmax.f32 %v60, 0.0
    %v67 = vmax.f32 %v61, 0.0
    %v68 = vmax.f32 %v62, 0.0
    %v69 = vmin.f32 %v63, 1.0
    %v70 = vmin.f32 %v64, 1.0
    %v71 = vmin.f32 %v65, 1.0
    %v72 = vmin.f32 %v66, 1.0
    %v73 = vmin.f32 %v67, 1.0
    %v74 = vmin.f32 %v68, 1.0
    %v75 = vpack.c.bf16 %v70, %v69
    %v76 = vpack.c.bf16 %v72, %v71
    %v77 = vpack.c.bf16 %v74, %v73
    %v78 = vld [vmem:[#allocation5] sm:$0xf]
    %v79 = vld [vmem:[#allocation5 + $0x4] sm:$0xf]
    %v82 = vunpack.c.l.b16 %v78
    %v83 = vunpack.c.l.b16 %v79
    %v84 = vpack.c.b16 %v83, %v82
    %vm86 = vcmask 130048
    %v88 = vsel %vm86, %v75, 0
    %v91 = vsel %vm86, %v76, 0
    %v94 = vsel %vm86, %v77, 0
    %96 = vmatprep.subr.bf16.mxu0 0
    %97 = vmatpush1.bf16.msra.mxu0 0
    %98 = vmatprep.subr.bf16.mxu0 0
    %99 = vmatpush1.bf16.msra.mxu0 0
    %100 = vmatprep.subr.bf16.mxu0 0
    %101 = vmatpush1.bf16.msra.mxu0 0
    %102 = vmatprep.subr.bf16.mxu0 0
    %103 = vmatpush1.bf16.msra.mxu0 0
    %104 = vmatprep.subr.bf16.mxu0 0
    %105 = vmatpush1.bf16.msra.mxu0 0
    %106 = vmatprep.subr.bf16.mxu0 0
    %107 = vmatpush1.bf16.msra.mxu0 0
    %108 = vmatprep.subr.bf16.mxu0 0
    %109 = vmatpush1.bf16.msra.mxu0 0
    %110 = vmatprep.subr.bf16.mxu0 0
    %111 = vmatpush1.bf16.msra.mxu0 %v84
    %112 = vmatprep.subr.bf16.mxu0 0
    %113 = vmatpush2.bf16.msra.mxu0 0
    %114 = vmatprep.subr.bf16.mxu0 0
    %115 = vmatpush2.bf16.msra.mxu0 0
    %116 = vmatprep.subr.bf16.mxu0 0
    %117 = vmatpush2.bf16.msra.mxu0 0
    %118 = vmatprep.subr.bf16.mxu0 0
    %119 = vmatpush2.bf16.msra.mxu0 0
    %120 = vmatprep.subr.bf16.mxu0 0
    %121 = vmatpush2.bf16.msra.mxu0 0
    %122 = vmatprep.subr.bf16.mxu0 0
    %123 = vmatpush2.bf16.msra.mxu0 0
    %124 = vmatprep.subr.bf16.mxu0 0
    %125 = vmatpush2.bf16.msra.mxu0 0
    %126 = vmatprep.subr.bf16.mxu0 0
    %127 = vmatpush2.bf16.msra.mxu0 0
    %128 = vmatprep.mubr.bf16.mxu0 0
    %129 = vmatmul.mubr.bf16.gmra.mxu0 %v88
    %v130 = vpop.f32.mrf.mxu0
    %v131 = vadd.f32 0.0, %v130
    %v132 = vpop.f32.mrf.mxu0
    %v133 = vpop.f32.mrf.mxu0
    %v134 = vadd.f32 0.0, %v133
    %v135 = vpop.f32.mrf.mxu0
    %136 = vmatprep.mubr.bf16.mxu0 0
    %137 = vmatmul.mubr.bf16.gmra.mxu0 %v91
    %v138 = vpop.f32.mrf.mxu0
    %v139 = vadd.f32 0.0, %v138
    %v140 = vpop.f32.mrf.mxu0
    %v141 = vpop.f32.mrf.mxu0
    %v142 = vadd.f32 0.0, %v141
    %v143 = vpop.f32.mrf.mxu0
    %144 = vmatprep.mubr.bf16.mxu0 0
    %145 = vmatmul.mubr.bf16.gmra.mxu0 %v94
    %v146 = vpop.f32.mrf.mxu0
    %v147 = vadd.f32 0.0, %v146
    %v148 = vpop.f32.mrf.mxu0
    %v149 = vpop.f32.mrf.mxu0
    %v150 = vadd.f32 0.0, %v149
    %v151 = vpop.f32.mrf.mxu0
    %152 = vdwg.mxu0
    %v153 = vpack.c.bf16 %v134, %v131
    %v154 = vpack.c.bf16 %v142, %v139
    %v155 = vpack.c.bf16 %v150, %v147
    %v156 = vld [vmem:[#allocation7] sm:$0xf]
    %v157 = vld [vmem:[#allocation7 + $0x4] sm:$0xf]
    %v160 = vunpack.c.l.b16 %v156
    %v161 = vunpack.c.l.b16 %v157
    %v162 = vpack.c.b16 %v161, %v160
    %v164 = vsel %vm86, %v162, 0
    %166 = vmatprep.subr.bf16.mxu0 0
    %167 = vmatpush1.bf16.msra.mxu0 0
    %168 = vmatprep.subr.bf16.mxu0 0
    %169 = vmatpush1.bf16.msra.mxu0 0
    %170 = vmatprep.subr.bf16.mxu0 0
    %171 = vmatpush1.bf16.msra.mxu0 0
    %172 = vmatprep.subr.bf16.mxu0 0
    %173 = vmatpush1.bf16.msra.mxu0 0
    %174 = vmatprep.subr.bf16.mxu0 0
    %175 = vmatpush1.bf16.msra.mxu0 0
    %176 = vmatprep.subr.bf16.mxu0 0
    %177 = vmatpush1.bf16.msra.mxu0 0
    %178 = vmatprep.subr.bf16.mxu0 0
    %179 = vmatpush1.bf16.msra.mxu0 0
    %180 = vmatprep.subr.bf16.mxu0 0
    %181 = vmatpush1.bf16.msra.mxu0 %v153
    %182 = vmatprep.subr.bf16.mxu0 0
    %183 = vmatpush2.bf16.msra.mxu0 0
    %184 = vmatprep.subr.bf16.mxu0 0
    %185 = vmatpush2.bf16.msra.mxu0 0
    %186 = vmatprep.subr.bf16.mxu0 0
    %187 = vmatpush2.bf16.msra.mxu0 0
    %188 = vmatprep.subr.bf16.mxu0 0
    %189 = vmatpush2.bf16.msra.mxu0 0
    %190 = vmatprep.subr.bf16.mxu0 0
    %191 = vmatpush2.bf16.msra.mxu0 0
    %192 = vmatprep.subr.bf16.mxu0 0
    %193 = vmatpush2.bf16.msra.mxu0 0
    %194 = vmatprep.subr.bf16.mxu0 0
    %195 = vmatpush2.bf16.msra.mxu0 0
    %196 = vmatprep.subr.bf16.mxu0 0
    %197 = vmatpush2.bf16.msra.mxu0 0
    %198 = vmatprep.mubr.bf16.mxu0 0
    %199 = vmatmul.mubr.bf16.gmra.mxu0 %v164
    %v200 = vpop.f32.mrf.mxu0
    %v201 = vadd.f32 0.0, %v200
    %v202 = vpop.f32.mrf.mxu0
    %v203 = vpop.f32.mrf.mxu0
    %v204 = vadd.f32 0.0, %v203
    %v205 = vpop.f32.mrf.mxu0
    %206 = vdwg.mxu0
    %207 = vst [vmem:[#allocation8] sm:$0xff] %v201
    %208 = vst [vmem:[#allocation8 + $0x8] sm:$0xff] %v204
    %v209 = vld [vmem:[#allocation7] sm:$0xf]
    %v210 = vld [vmem:[#allocation7 + $0x4] sm:$0xf]
    %v213 = vunpack.c.l.b16 %v209
    %v214 = vunpack.c.l.b16 %v210
    %v215 = vpack.c.b16 %v214, %v213
    %v217 = vsel %vm86, %v215, 0
    %219 = vmatprep.subr.bf16.mxu0 0
    %220 = vmatpush1.bf16.msra.mxu0 0
    %221 = vmatprep.subr.bf16.mxu0 0
    %222 = vmatpush1.bf16.msra.mxu0 0
    %223 = vmatprep.subr.bf16.mxu0 0
    %224 = vmatpush1.bf16.msra.mxu0 0
    %225 = vmatprep.subr.bf16.mxu0 0
    %226 = vmatpush1.bf16.msra.mxu0 0
    %227 = vmatprep.subr.bf16.mxu0 0
    %228 = vmatpush1.bf16.msra.mxu0 0
    %229 = vmatprep.subr.bf16.mxu0 0
    %230 = vmatpush1.bf16.msra.mxu0 0
    %231 = vmatprep.subr.bf16.mxu0 0
    %232 = vmatpush1.bf16.msra.mxu0 0
    %233 = vmatprep.subr.bf16.mxu0 0
    %234 = vmatpush1.bf16.msra.mxu0 %v154
    %235 = vmatprep.subr.bf16.mxu0 0
    %236 = vmatpush2.bf16.msra.mxu0 0
    %237 = vmatprep.subr.bf16.mxu0 0
    %238 = vmatpush2.bf16.msra.mxu0 0
    %239 = vmatprep.subr.bf16.mxu0 0
    %240 = vmatpush2.bf16.msra.mxu0 0
    %241 = vmatprep.subr.bf16.mxu0 0
    %242 = vmatpush2.bf16.msra.mxu0 0
    %243 = vmatprep.subr.bf16.mxu0 0
    %244 = vmatpush2.bf16.msra.mxu0 0
    %245 = vmatprep.subr.bf16.mxu0 0
    %246 = vmatpush2.bf16.msra.mxu0 0
    %247 = vmatprep.subr.bf16.mxu0 0
    %248 = vmatpush2.bf16.msra.mxu0 0
    %249 = vmatprep.subr.bf16.mxu0 0
    %250 = vmatpush2.bf16.msra.mxu0 0
    %251 = vmatprep.mubr.bf16.mxu0 0
    %252 = vmatmul.mubr.bf16.gmra.mxu0 %v217
    %v253 = vpop.f32.mrf.mxu0
    %v254 = vadd.f32 0.0, %v253
    %v255 = vpop.f32.mrf.mxu0
    %v256 = vpop.f32.mrf.mxu0
    %v257 = vadd.f32 0.0, %v256
    %v258 = vpop.f32.mrf.mxu0
    %259 = vdwg.mxu0
    %s260 = scalar_lea.vmem [#allocation8], 16
    %261 = vst [vmem:[%s260] sm:$0xff] %v254
    %262 = vst [vmem:[%s260 + $0x8] sm:$0xff] %v257
    %v263 = vld [vmem:[#allocation7] sm:$0xf]
    %v264 = vld [vmem:[#allocation7 + $0x4] sm:$0xf]
    %v267 = vunpack.c.l.b16 %v263
    %v268 = vunpack.c.l.b16 %v264
    %v269 = vpack.c.b16 %v268, %v267
    %v271 = vsel %vm86, %v269, 0
    %273 = vmatprep.subr.bf16.mxu0 0
    %274 = vmatpush1.bf16.msra.mxu0 0
    %275 = vmatprep.subr.bf16.mxu0 0
    %276 = vmatpush1.bf16.msra.mxu0 0
    %277 = vmatprep.subr.bf16.mxu0 0
    %278 = vmatpush1.bf16.msra.mxu0 0
    %279 = vmatprep.subr.bf16.mxu0 0
    %280 = vmatpush1.bf16.msra.mxu0 0
    %281 = vmatprep.subr.bf16.mxu0 0
    %282 = vmatpush1.bf16.msra.mxu0 0
    %283 = vmatprep.subr.bf16.mxu0 0
    %284 = vmatpush1.bf16.msra.mxu0 0
    %285 = vmatprep.subr.bf16.mxu0 0
    %286 = vmatpush1.bf16.msra.mxu0 0
    %287 = vmatprep.subr.bf16.mxu0 0
    %288 = vmatpush1.bf16.msra.mxu0 %v155
    %289 = vmatprep.subr.bf16.mxu0 0
    %290 = vmatpush2.bf16.msra.mxu0 0
    %291 = vmatprep.subr.bf16.mxu0 0
    %292 = vmatpush2.bf16.msra.mxu0 0
    %293 = vmatprep.subr.bf16.mxu0 0
    %294 = vmatpush2.bf16.msra.mxu0 0
    %295 = vmatprep.subr.bf16.mxu0 0
    %296 = vmatpush2.bf16.msra.mxu0 0
    %297 = vmatprep.subr.bf16.mxu0 0
    %298 = vmatpush2.bf16.msra.mxu0 0
    %299 = vmatprep.subr.bf16.mxu0 0
    %300 = vmatpush2.bf16.msra.mxu0 0
    %301 = vmatprep.subr.bf16.mxu0 0
    %302 = vmatpush2.bf16.msra.mxu0 0
    %303 = vmatprep.subr.bf16.mxu0 0
    %304 = vmatpush2.bf16.msra.mxu0 0
    %305 = vmatprep.mubr.bf16.mxu0 0
    %306 = vmatmul.mubr.bf16.gmra.mxu0 %v271
    %v307 = vpop.f32.mrf.mxu0
    %v308 = vadd.f32 0.0, %v307
    %v309 = vpop.f32.mrf.mxu0
    %v310 = vpop.f32.mrf.mxu0
    %v311 = vadd.f32 0.0, %v310
    %v312 = vpop.f32.mrf.mxu0
    %313 = vdwg.mxu0
    %s314 = scalar_lea.vmem [#allocation8], 32
    %315 = vst [vmem:[%s314] sm:$0xff] %v308
    %316 = vst [vmem:[%s314 + $0x8] sm:$0xff] %v311
    // Predicated region
    $region26: #{tpu_custom_call.1} parent=1 // pred_check
      _
    $region27: #{tpu_custom_call.1} parent=1 // pred_check_branch
      %318 = sbr.rel (0) target = $region29
    $region28: #{tpu_custom_call.1} parent=1 // pred_region
      %s320 = ssub.s32 768, 768
      %321 = vsyncadd [#allocation4], %s320
      %s322 = sshll.u32 [#allocation8], 4
      %s323 = int_to_ptr.vmem [resolvable:$true] %s322
      %328 = dma.vmem_to_hbm [thread:$0]  %s323, 768, %s3, [#allocation4], 128, 128, 8
    $region29: #{tpu_custom_call.1} parent=1 // pred_fallthru
      _
    // Predicated region
    $region30: #{tpu_custom_call.1} parent=1 // pred_check
      _
    $region31: #{tpu_custom_call.1} parent=1 // pred_check_branch
      %330 = sbr.rel (0) target = $region33
    $region32: #{tpu_custom_call.1} parent=1 // pred_region
      %331 = dma.done [#allocation4], 768
    $region33: #{tpu_custom_call.1} parent=1 // pred_fallthru
      _
    %332 = vsyncpa [#allocation3], 1
    %333 = vsyncpa [#allocation6], 1
    %334 = vsyncpa [#allocation4], 1

</llo_original>
